<compile_context>
chip_gen: v7x
topology: tpu7x:2x2x1
jax: 0.10.0
libtpu: 0.0.40
codegen_flags: <defaults>
</compile_context>

<pallas_src>
import functools

import jax
import jax.numpy as jnp
from jax.experimental import pallas as pl
from jax.experimental.pallas import tpu as pltpu


def _round_up(a: int, m: int) -> int:
    return -(-a // m) * m


def sugrl_mlp_kernel(x_ref, wt_ref, b_ref, o_ref, acc_ref):
    """One (row-tile, K-tile) step: fused ReLU (VPU) + matmul (MXU) + bias add."""
    k = pl.program_id(1)

    @pl.when(k == 0)
    def _():
        acc_ref[...] = jnp.zeros_like(acc_ref)

    # ReLU on the loaded tile, then MXU matmul with f32 accumulation.
    x = jnp.maximum(x_ref[...], jnp.zeros((), x_ref.dtype))
    acc_ref[...] += jnp.dot(x, wt_ref[...], preferred_element_type=jnp.float32)

    @pl.when(k == pl.num_programs(1) - 1)
    def _():
        o_ref[...] = (acc_ref[...] + b_ref[...]).astype(o_ref.dtype)


def sugrl_mlp_forward(x, w, b, *, tile_k=512, compute_dtype=None,
                      vmem_budget_bytes=16 * 1024 * 1024):
    """x: (N, F), w: (out_dim, F), b: (out_dim,) -> (N, out_dim).

    Equivalent to eval-mode SugrlMLP: Linear(ReLU(x)) with PyTorch weight layout.
    """
    N, F = x.shape
    out_dim, f_in = w.shape
    assert f_in == F and b.shape == (out_dim,)

    orig_dtype = x.dtype
    if compute_dtype is not None:
        x = x.astype(compute_dtype)
        w = w.astype(compute_dtype)

    itemsize = jnp.dtype(x.dtype).itemsize
    out_itemsize = jnp.dtype(orig_dtype).itemsize

    # ---- lane-dense output: pad out_dim to a multiple of 128 ----
    out_pad = _round_up(out_dim, 128)

    # ---- K (feature) tiling: full F if small, else 512-column chunks ----
    if F <= tile_k:
        tk = F
        f_pad = F
    else:
        tk = tile_k
        f_pad = _round_up(F, tile_k)

    # ---- pick tile_m: largest candidate under the VMEM budget, capped at N ----
    tile_m = 8
    for cand in (1024, 512, 256, 128, 64, 32, 16, 8):
        est = (2 * cand * tk * itemsize            # x tile, double-buffered
               + 2 * tk * out_pad * itemsize       # weight tile, double-buffered
               + 2 * cand * out_pad * out_itemsize # output tile, double-buffered
               + cand * out_pad * 4                # f32 accumulator scratch
               + 2 * out_pad * 4)                  # bias
        if est <= vmem_budget_bytes:
            tile_m = cand
            break
    tile_m = min(tile_m, _round_up(N, 8))          # don't over-pad tiny batches

    n_pad = _round_up(N, tile_m)

    # ---- wrapper-side padding (zeros are exact: ReLU(0)=0, 0*w=0) ----
    if n_pad != N or f_pad != F:
        x = jnp.pad(x, ((0, n_pad - N), (0, f_pad - F)))
    wt = w.T                                        # (F, out_dim)
    if f_pad != F or out_pad != out_dim:
        wt = jnp.pad(wt, ((0, f_pad - F), (0, out_pad - out_dim)))
    b2 = b.reshape(1, out_dim).astype(jnp.float32)
    if out_pad != out_dim:
        b2 = jnp.pad(b2, ((0, 0), (0, out_pad - out_dim)))

    grid = (n_pad // tile_m, f_pad // tk)           # reduction (K) axis last

    out = pl.pallas_call(
        sugrl_mlp_kernel,
        out_shape=jax.ShapeDtypeStruct((n_pad, out_pad), orig_dtype),
        grid=grid,
        in_specs=[
            pl.BlockSpec((tile_m, tk), lambda i, k: (i, k)),    # x row/K tile
            pl.BlockSpec((tk, out_pad), lambda i, k: (k, 0)),   # weight K tile
            pl.BlockSpec((1, out_pad), lambda i, k: (0, 0)),    # bias (resident)
        ],
        out_specs=pl.BlockSpec((tile_m, out_pad), lambda i, k: (i, 0)),
        scratch_shapes=[pltpu.VMEM((tile_m, out_pad), jnp.float32)],
        compiler_params=pltpu.CompilerParams(
            dimension_semantics=("parallel", "arbitrary"),
            vmem_limit_bytes=32 * 1024 * 1024,
        ),
    )(x, wt, b2)

    return out[:N, :out_dim]


def _ref(x, w, b):
    return jnp.maximum(x, 0.0) @ w.T + b


def _make_params(key, n, f, out_dim):
    kx, kw, kb = jax.random.split(key, 3)
    x = jax.random.normal(kx, (n, f), dtype=jnp.float32)
    bound = 1.0 / (f ** 0.5)  # PyTorch-style Linear init
    w = jax.random.uniform(kw, (out_dim, f), jnp.float32, -bound, bound)
    b = jax.random.uniform(kb, (out_dim,), jnp.float32, -bound, bound)
    return x, w, b


if __name__ == "__main__":
    key = jax.random.PRNGKey(0)
    k1, k2 = jax.random.split(key)

    # Case 1: default-ish module shapes (cfg=[512, 128]); N not a multiple of 8.
    x, w, b = _make_params(k1, 50, 32, 128)
    out = jax.block_until_ready(sugrl_mlp_forward(x, w, b))
    ref = _ref(x, w, b)
    assert out.shape == (50, 128), out.shape
    assert jnp.allclose(out, ref, atol=1e-5, rtol=1e-5), float(jnp.max(jnp.abs(out - ref)))

    # Case 2: exercises K-tiling (F > 512, padded), out_dim padding (96 -> 128).
    x2, w2, b2 = _make_params(k2, 24, 600, 96)
    out2 = jax.block_until_ready(sugrl_mlp_forward(x2, w2, b2))
    ref2 = _ref(x2, w2, b2)
    assert out2.shape == (24, 96), out2.shape
    assert jnp.allclose(out2, ref2, atol=1e-4, rtol=1e-4), float(jnp.max(jnp.abs(out2 - ref2)))

    print("KERNEL_OK")
</pallas_src>

<mosaic_0001>
module attributes {stable_mosaic.version = 11 : i64} {
  func.func @sugrl_mlp_kernel(%arg0: i32, %arg1: i32, %arg2: memref<56x32xf32, #tpu.memory_space<vmem>>, %arg3: memref<32x128xf32, #tpu.memory_space<vmem>>, %arg4: memref<1x128xf32, #tpu.memory_space<vmem>>, %arg5: memref<56x128xf32, #tpu.memory_space<vmem>>, %arg6: memref<56x128xf32, #tpu.memory_space<vmem>>) attributes {dimension_semantics = [#tpu.dimension_semantics<parallel>, #tpu.dimension_semantics<arbitrary>], iteration_bounds = array<i64: 1, 1>, scalar_prefetch = 0 : i64, scratch_operands = 1 : i64, tpu.core_type = #tpu.core_type<tc>, window_params = [{transform_indices = @transform_0, window_bounds = array<i64: 56, 32>}, {transform_indices = @transform_1, window_bounds = array<i64: 32, 128>}, {pipeline_mode = #tpu.pipeline_mode<synchronous>, transform_indices = @transform_2, window_bounds = array<i64: 1, 128>}, {transform_indices = @transform_3, window_bounds = array<i64: 56, 128>}]} {
    %c0_i32 = arith.constant 0 : i32
    %0 = arith.cmpi eq, %arg1, %c0_i32 : i32
    %1 = arith.extui %0 : i1 to i32
    %c0_i32_0 = arith.constant 0 : i32
    %2 = arith.cmpi ne, %1, %c0_i32_0 : i32
    scf.if %2 {
      %cst_11 = arith.constant 0.000000e+00 : f32
      %14 = vector.broadcast %cst_11 : f32 to vector<56x128xf32>
      %c0_12 = arith.constant 0 : index
      %c0_13 = arith.constant 0 : index
      %15 = vector.load %arg6[%c0_12, %c0_13] : memref<56x128xf32, #tpu.memory_space<vmem>>, vector<56x128xf32>
      tpu.vector_store %arg6[%c0_12, %c0_13], %14 {strides = array<i32>} : memref<56x128xf32, #tpu.memory_space<vmem>>, vector<56x128xf32>,
    } else {
    }
    %c0 = arith.constant 0 : index
    %c0_1 = arith.constant 0 : index
    %3 = vector.load %arg2[%c0, %c0_1] : memref<56x32xf32, #tpu.memory_space<vmem>>, vector<56x32xf32>
    %cst = arith.constant 0.000000e+00 : f32
    %4 = vector.broadcast %cst : f32 to vector<56x32xf32>
    %5 = arith.maximumf %3, %4 : vector<56x32xf32>
    %c0_2 = arith.constant 0 : index
    %c0_3 = arith.constant 0 : index
    %6 = vector.load %arg6[%c0_2, %c0_3] : memref<56x128xf32, #tpu.memory_space<vmem>>, vector<56x128xf32>
    %c0_4 = arith.constant 0 : index
    %c0_5 = arith.constant 0 : index
    %7 = vector.load %arg3[%c0_4, %c0_5] : memref<32x128xf32, #tpu.memory_space<vmem>>, vector<32x128xf32>
    %cst_6 = arith.constant dense<0.000000e+00> : vector<56x128xf32>
    %8 = tpu.matmul %5, %7, %cst_6 {dimension_numbers = #tpu.dot_dimension_numbers<[1], [0], [0], [1], [0, 0, 1, 1], [], []>} : vector<56x32xf32>, vector<32x128xf32>, vector<56x128xf32> -> vector<56x128xf32>
    %9 = arith.addf %6, %8 : vector<56x128xf32>
    %c0_7 = arith.constant 0 : index
    %c0_8 = arith.constant 0 : index
    %10 = vector.load %arg6[%c0_7, %c0_8] : memref<56x128xf32, #tpu.memory_space<vmem>>, vector<56x128xf32>
    tpu.vector_store %arg6[%c0_7, %c0_8], %9 {strides = array<i32>} : memref<56x128xf32, #tpu.memory_space<vmem>>, vector<56x128xf32>,
    %c0_i32_9 = arith.constant 0 : i32
    %11 = arith.cmpi eq, %arg1, %c0_i32_9 : i32
    %12 = arith.extui %11 : i1 to i32
    %c0_i32_10 = arith.constant 0 : i32
    %13 = arith.cmpi ne, %12, %c0_i32_10 : i32
    scf.if %13 {
      %c0_11 = arith.constant 0 : index
      %c0_12 = arith.constant 0 : index
      %14 = vector.load %arg6[%c0_11, %c0_12] : memref<56x128xf32, #tpu.memory_space<vmem>>, vector<56x128xf32>
      %c0_13 = arith.constant 0 : index
      %c0_14 = arith.constant 0 : index
      %15 = vector.load %arg4[%c0_13, %c0_14] : memref<1x128xf32, #tpu.memory_space<vmem>>, vector<1x128xf32>
      %16 = vector.broadcast %15 : vector<1x128xf32> to vector<56x128xf32>
      %17 = arith.addf %14, %16 : vector<56x128xf32>
      %c0_15 = arith.constant 0 : index
      %c0_16 = arith.constant 0 : index
      %18 = vector.load %arg5[%c0_15, %c0_16] : memref<56x128xf32, #tpu.memory_space<vmem>>, vector<56x128xf32>
      tpu.vector_store %arg5[%c0_15, %c0_16], %17 {strides = array<i32>} : memref<56x128xf32, #tpu.memory_space<vmem>>, vector<56x128xf32>,
    } else {
    }
    return
  }
  func.func @transform_0(%arg0: i32, %arg1: i32) -> (i32, i32) {
    %c0_i32 = arith.constant 0 : i32
    return %arg0, %arg1 : i32, i32
  }
  func.func @transform_1(%arg0: i32, %arg1: i32) -> (i32, i32) {
    %c0_i32 = arith.constant 0 : i32
    %c0_i32_0 = arith.constant 0 : i32
    return %arg1, %c0_i32 : i32, i32
  }
  func.func @transform_2(%arg0: i32, %arg1: i32) -> (i32, i32) {
    %c0_i32 = arith.constant 0 : i32
    %c0_i32_0 = arith.constant 0 : i32
    %c0_i32_1 = arith.constant 0 : i32
    return %c0_i32, %c0_i32_0 : i32, i32
  }
  func.func @transform_3(%arg0: i32, %arg1: i32) -> (i32, i32) {
    %c0_i32 = arith.constant 0 : i32
    %c0_i32_0 = arith.constant 0 : i32
    return %arg0, %c0_i32 : i32, i32
  }
}

</mosaic_0001>

<llo_original>
// kernel: tpu_custom_call.1
$region0: #{tpu_custom_call.1}
  #allocation0 [shape = 'u32[]', space=smem, size = 0x4, offset = 0x4, fixed_abs, tag = 'smem constant byte address 0x4 - core index']
  #allocation1 [shape = 'u32[144,128]{1,0:T(1,128)}', space=vmem, size = 0x12000, scoped, tag = 'internal scratch']
  #allocation2 [shape = 'f32[56,128]{1,0:T(8,128)}', space=vmem, size = 0x7000, scoped, tag = 'scratch operand']
  %s0 = inlined_call_operand.vmem [shape: f32[56,32], index: 0, kind: input, shape index: {}]
  %s1 = inlined_call_operand.vmem [shape: f32[32,128], index: 1, kind: input, shape index: {}]
  %s2 = inlined_call_operand.vmem [shape: f32[1,128], index: 2, kind: input, shape index: {}]
  %s3 = inlined_call_operand.hbm [shape: f32[56,128], index: 3, kind: output, shape index: {}]
  %s4 = sld [smem:[#allocation0]]
  $region30: #{tpu_custom_call.1} parent=0
    _
  %s6 = ssub.s32 1, %s4
  %s7 = scalar_select 0, %s6, %s4
  $region1: #{tpu_custom_call.1} parent=0
    #allocation3 [shape = 'u8[28672]{0}', space=vmem, size = 0x7000, scoped, tag = 'output window, operand 0, single buffered']
    #allocation4 [shape = 's32[1]{0}', space=sflag, size = 0x4, scoped, tag = 'scoped memory for tpu_custom_call.1']
    %8 = vsyncpa [#allocation4], 0
    // Predicated region
    $region2: #{tpu_custom_call.1} parent=1 // pred_check
      _
    $region3: #{tpu_custom_call.1} parent=1 // pred_check_branch
      %10 = sbr.rel (0) target = $region5
    $region4: #{tpu_custom_call.1} parent=1 // pred_region
      _
    $region5: #{tpu_custom_call.1} parent=1 // pred_fallthru
      _
    // Predicated region
    $region6: #{tpu_custom_call.1} parent=1 // pred_check
      _
    $region7: #{tpu_custom_call.1} parent=1 // pred_check_branch
      %12 = sbr.rel (0) target = $region9
    $region8: #{tpu_custom_call.1} parent=1 // pred_region
      _
    $region9: #{tpu_custom_call.1} parent=1 // pred_fallthru
      _
    // Predicated region
    $region10: #{tpu_custom_call.1} parent=1 // pred_check
      _
    $region11: #{tpu_custom_call.1} parent=1 // pred_check_branch
      %14 = sbr.rel (0) target = $region13
    $region12: #{tpu_custom_call.1} parent=1 // pred_region
      _
    $region13: #{tpu_custom_call.1} parent=1 // pred_fallthru
      _
    %p15 = scmp.eq.s32.totalorder 0, 0
    // Predicated region
    $region14: #{tpu_custom_call.1} parent=1 // pred_check
      %p16 = pneg %p15
    $region15: #{tpu_custom_call.1} parent=1 // pred_check_branch
      %18 = sbr.rel (%p16) target = $region17
    $region16: #{tpu_custom_call.1} parent=1 // pred_region
      %19 = vst [vmem:[#allocation2] sm:$0xff] 0.0
      %20 = vst [vmem:[#allocation2 + $0x8] sm:$0xff] 0.0
      %21 = vst [vmem:[#allocation2 + $0x10] sm:$0xff] 0.0
      %22 = vst [vmem:[#allocation2 + $0x18] sm:$0xff] 0.0
      %23 = vst [vmem:[#allocation2 + $0x20] sm:$0xff] 0.0
      %24 = vst [vmem:[#allocation2 + $0x28] sm:$0xff] 0.0
      %25 = vst [vmem:[#allocation2 + $0x30] sm:$0xff] 0.0
    $region17: #{tpu_custom_call.1} parent=1 // pred_fallthru
      _
    %v26 = vld [vmem:[%s0] sm:$0xff]
    %v27 = vld [vmem:[%s0 + $0x8] sm:$0xff]
    %v28 = vld [vmem:[%s0 + $0x10] sm:$0xff]
    %v29 = vld [vmem:[%s0 + $0x18] sm:$0xff]
    %v30 = vld [vmem:[%s0 + $0x20] sm:$0xff]
    %v31 = vld [vmem:[%s0 + $0x28] sm:$0xff]
    %v32 = vld [vmem:[%s0 + $0x30] sm:$0xff]
    %v33 = vmax.f32 %v26, 0.0
    %v34 = vmax.f32 %v27, 0.0
    %v35 = vmax.f32 %v28, 0.0
    %v36 = vmax.f32 %v29, 0.0
    %v37 = vmax.f32 %v30, 0.0
    %v38 = vmax.f32 %v31, 0.0
    %v39 = vmax.f32 %v32, 0.0
    %v40 = vld [vmem:[#allocation2] sm:$0xff]
    %v41 = vld [vmem:[#allocation2 + $0x8] sm:$0xff]
    %v42 = vld [vmem:[#allocation2 + $0x10] sm:$0xff]
    %v43 = vld [vmem:[#allocation2 + $0x18] sm:$0xff]
    %v44 = vld [vmem:[#allocation2 + $0x20] sm:$0xff]
    %v45 = vld [vmem:[#allocation2 + $0x28] sm:$0xff]
    %v46 = vld [vmem:[#allocation2 + $0x30] sm:$0xff]
    %v47 = vld [vmem:[%s1] sm:$0xff]
    %v48 = vld [vmem:[%s1 + $0x8] sm:$0xff]
    %v49 = vld [vmem:[%s1 + $0x10] sm:$0xff]
    %v50 = vld [vmem:[%s1 + $0x18] sm:$0xff]
    %vm51 = vcmask 261120
    %v53 = vsel %vm51, %v33, 0
    %v56 = vsel %vm51, %v34, 0
    %v59 = vsel %vm51, %v35, 0
    %v62 = vsel %vm51, %v36, 0
    %v65 = vsel %vm51, %v37, 0
    %v68 = vsel %vm51, %v38, 0
    %v71 = vsel %vm51, %v39, 0
    %73 = vmatprep.subr.mxu0 0.0
    %74 = vmatpush1.msra.mxu0 %v47
    %75 = vmatprep.subr.mxu0 0.0
    %76 = vmatpush1.msra.mxu0 %v48
    %77 = vmatprep.subr.mxu0 0.0
    %78 = vmatpush1.msra.mxu0 %v49
    %79 = vmatprep.subr.mxu0 0.0
    %80 = vmatpush1.msra.mxu0 %v50
    %81 = vmatprep.subr.mxu0 0.0
    %82 = vmatpush1.msra.mxu0 0.0
    %83 = vmatprep.subr.mxu0 0.0
    %84 = vmatpush1.msra.mxu0 0.0
    %85 = vmatprep.subr.mxu0 0.0
    %86 = vmatpush1.msra.mxu0 0.0
    %87 = vmatprep.subr.mxu0 0.0
    %88 = vmatpush1.msra.mxu0 0.0
    %89 = vmatprep.subr.mxu0 0.0
    %90 = vmatpush1.msra.mxu0 0.0
    %91 = vmatprep.subr.mxu0 0.0
    %92 = vmatpush1.msra.mxu0 0.0
    %93 = vmatprep.subr.mxu0 0.0
    %94 = vmatpush1.msra.mxu0 0.0
    %95 = vmatprep.subr.mxu0 0.0
    %96 = vmatpush1.msra.mxu0 0.0
    %97 = vmatprep.subr.mxu0 0.0
    %98 = vmatpush1.msra.mxu0 0.0
    %99 = vmatprep.subr.mxu0 0.0
    %100 = vmatpush1.msra.mxu0 0.0
    %101 = vmatprep.subr.mxu0 0.0
    %102 = vmatpush1.msra.mxu0 0.0
    %103 = vmatprep.subr.mxu0 0.0
    %104 = vmatpush1.msra.mxu0 0.0
    %105 = vmatprep.subr.mxu0 0.0
    %106 = vmatpush1.msra.mxu0 0.0
    %107 = vmatprep.subr.mxu0 0.0
    %108 = vmatpush1.msra.mxu0 0.0
    %109 = vmatprep.subr.mxu0 0.0
    %110 = vmatpush1.msra.mxu0 0.0
    %111 = vmatprep.subr.mxu0 0.0
    %112 = vmatpush1.msra.mxu0 0.0
    %113 = vmatprep.subr.mxu0 0.0
    %114 = vmatpush1.msra.mxu0 0.0
    %115 = vmatprep.subr.mxu0 0.0
    %116 = vmatpush1.msra.mxu0 0.0
    %117 = vmatprep.subr.mxu0 0.0
    %118 = vmatpush1.msra.mxu0 0.0
    %119 = vmatprep.subr.mxu0 0.0
    %120 = vmatpush1.msra.mxu0 0.0
    %121 = vmatprep.subr.mxu0 0.0
    %122 = vmatpush1.msra.mxu0 0.0
    %123 = vmatprep.subr.mxu0 0.0
    %124 = vmatpush1.msra.mxu0 0.0
    %125 = vmatprep.subr.mxu0 0.0
    %126 = vmatpush1.msra.mxu0 0.0
    %127 = vmatprep.subr.mxu0 0.0
    %128 = vmatpush1.msra.mxu0 0.0
    %129 = vmatprep.subr.mxu0 0.0
    %130 = vmatpush1.msra.mxu0 0.0
    %131 = vmatprep.subr.mxu0 0.0
    %132 = vmatpush1.msra.mxu0 0.0
    %133 = vmatprep.subr.mxu0 0.0
    %134 = vmatpush1.msra.mxu0 0.0
    %135 = vmatprep.subr.mxu0 0.0
    %136 = vmatpush1.msra.mxu0 0.0
    %137 = vmatprep.mubr.f32.mxu0 0.0
    %138 = vmatmul.mubr.f32.gmra.mrb[0].mxu0 %v53
    %v139 = vpop.f32.mrb[0].mxu0
    %v140 = vadd.f32 0.0, %v139
    %v141 = vpop.f32.mrb[0].mxu0
    %142 = vmatprep.mubr.f32.mxu0 0.0
    %143 = vmatmul.mubr.f32.gmra.mrb[0].mxu0 %v56
    %v144 = vpop.f32.mrb[0].mxu0
    %v145 = vadd.f32 0.0, %v144
    %v146 = vpop.f32.mrb[0].mxu0
    %147 = vmatprep.mubr.f32.mxu0 0.0
    %148 = vmatmul.mubr.f32.gmra.mrb[0].mxu0 %v59
    %v149 = vpop.f32.mrb[0].mxu0
    %v150 = vadd.f32 0.0, %v149
    %v151 = vpop.f32.mrb[0].mxu0
    %152 = vmatprep.mubr.f32.mxu0 0.0
    %153 = vmatmul.mubr.f32.gmra.mrb[0].mxu0 %v62
    %v154 = vpop.f32.mrb[0].mxu0
    %v155 = vadd.f32 0.0, %v154
    %v156 = vpop.f32.mrb[0].mxu0
    %157 = vmatprep.mubr.f32.mxu0 0.0
    %158 = vmatmul.mubr.f32.gmra.mrb[0].mxu0 %v65
    %v159 = vpop.f32.mrb[0].mxu0
    %v160 = vadd.f32 0.0, %v159
    %v161 = vpop.f32.mrb[0].mxu0
    %162 = vmatprep.mubr.f32.mxu0 0.0
    %163 = vmatmul.mubr.f32.gmra.mrb[0].mxu0 %v68
    %v164 = vpop.f32.mrb[0].mxu0
    %v165 = vadd.f32 0.0, %v164
    %v166 = vpop.f32.mrb[0].mxu0
    %167 = vmatprep.mubr.f32.mxu0 0.0
    %168 = vmatmul.mubr.f32.gmra.mrb[0].mxu0 %v71
    %v169 = vpop.f32.mrb[0].mxu0
    %v170 = vadd.f32 0.0, %v169
    %v171 = vpop.f32.mrb[0].mxu0
    %172 = vdwg.mxu0
    %v173 = vadd.f32 %v40, %v140
    %v174 = vadd.f32 %v41, %v145
    %v175 = vadd.f32 %v42, %v150
    %v176 = vadd.f32 %v43, %v155
    %v177 = vadd.f32 %v44, %v160
    %v178 = vadd.f32 %v45, %v165
    %v179 = vadd.f32 %v46, %v170
    %180 = vst [vmem:[#allocation2] sm:$0xff] %v173
    %181 = vst [vmem:[#allocation2 + $0x8] sm:$0xff] %v174
    %182 = vst [vmem:[#allocation2 + $0x10] sm:$0xff] %v175
    %183 = vst [vmem:[#allocation2 + $0x18] sm:$0xff] %v176
    %184 = vst [vmem:[#allocation2 + $0x20] sm:$0xff] %v177
    %185 = vst [vmem:[#allocation2 + $0x28] sm:$0xff] %v178
    %186 = vst [vmem:[#allocation2 + $0x30] sm:$0xff] %v179
    // Predicated region
    $region18: #{tpu_custom_call.1} parent=1 // pred_check
      %p187 = pneg %p15
    $region19: #{tpu_custom_call.1} parent=1 // pred_check_branch
      %189 = sbr.rel (%p187) target = $region21
    $region20: #{tpu_custom_call.1} parent=1 // pred_region
      %v190 = vld [vmem:[#allocation2] sm:$0xff]
      %v191 = vld [vmem:[#allocation2 + $0x8] sm:$0xff]
      %v192 = vld [vmem:[#allocation2 + $0x10] sm:$0xff]
      %v193 = vld [vmem:[#allocation2 + $0x18] sm:$0xff]
      %v194 = vld [vmem:[#allocation2 + $0x20] sm:$0xff]
      %v195 = vld [vmem:[#allocation2 + $0x28] sm:$0xff]
      %v196 = vld [vmem:[#allocation2 + $0x30] sm:$0xff]
      %v197 = vld [vmem:[%s2] sm:$0x1]
      %v199 = vlaneseq
      %v200 = vshrl.u32 %v199, 7
      %v201 = vsub.s32 0, %v200
      %v202 = vrot.slane %v197, %v201
      %v204 = vadd.f32 %v190, %v202
      %v205 = vadd.f32 %v191, %v202
      %v206 = vadd.f32 %v192, %v202
      %v207 = vadd.f32 %v193, %v202
      %v208 = vadd.f32 %v194, %v202
      %v209 = vadd.f32 %v195, %v202
      %v210 = vadd.f32 %v196, %v202
      %211 = vst [vmem:[#allocation3] sm:$0xff] %v204
      %212 = vst [vmem:[#allocation3 + $0x8] sm:$0xff] %v205
      %213 = vst [vmem:[#allocation3 + $0x10] sm:$0xff] %v206
      %214 = vst [vmem:[#allocation3 + $0x18] sm:$0xff] %v207
      %215 = vst [vmem:[#allocation3 + $0x20] sm:$0xff] %v208
      %216 = vst [vmem:[#allocation3 + $0x28] sm:$0xff] %v209
      %217 = vst [vmem:[#allocation3 + $0x30] sm:$0xff] %v210
    $region21: #{tpu_custom_call.1} parent=1 // pred_fallthru
      _
    // Predicated region
    $region22: #{tpu_custom_call.1} parent=1 // pred_check
      _
    $region23: #{tpu_custom_call.1} parent=1 // pred_check_branch
      %219 = sbr.rel (0) target = $region25
    $region24: #{tpu_custom_call.1} parent=1 // pred_region
      %s221 = ssub.s32 896, 896
      %222 = vsyncadd [#allocation4], %s221
      %s223 = sshll.u32 [#allocation3], 4
      %s224 = int_to_ptr.vmem [resolvable:$true] %s223
      %229 = dma.vmem_to_hbm [thread:$0]  %s224, 896, %s3, [#allocation4], 128, 128, 8
    $region25: #{tpu_custom_call.1} parent=1 // pred_fallthru
      _
    // Predicated region
    $region26: #{tpu_custom_call.1} parent=1 // pred_check
      _
    $region27: #{tpu_custom_call.1} parent=1 // pred_check_branch
      %231 = sbr.rel (0) target = $region29
    $region28: #{tpu_custom_call.1} parent=1 // pred_region
      %232 = dma.done [#allocation4], 896
    $region29: #{tpu_custom_call.1} parent=1 // pred_fallthru
      _
    %233 = vsyncpa [#allocation4], 1

</llo_original>
